<compile_context>
chip_gen: v7x
topology: tpu7x:2x2x1
jax: 0.10.0
libtpu: 0.0.40
codegen_flags: <defaults>
</compile_context>

<pallas_src>
from functools import partial

import jax
import jax.numpy as jnp
from jax.experimental import pallas as pl
from jax.experimental.pallas import tpu as pltpu


# ---------------------------------------------------------------------------
# Kernels
# ---------------------------------------------------------------------------

def _matmul_lrelu_kernel(a_ref, b_ref, o_ref, *, neg_slope: float):
    """One full-K GEMM tile (bf16 operands, f32 MXU acc) + fused LeakyReLU."""
    y = jnp.dot(a_ref[...], b_ref[...], preferred_element_type=jnp.float32)
    o_ref[...] = jnp.where(y >= 0, y, neg_slope * y).astype(o_ref.dtype)


def _matmul_bn_lrelu_kernel(a_ref, b_ref, gamma_ref, beta_ref, o_ref,
                            s_ref, ss_ref, *, tm: int, inv_m: float,
                            eps: float, neg_slope: float):
    """Fused conv-GEMM + batch statistics + BatchNorm affine + LeakyReLU.

    The full (M_pad, OC_pad) f32 output block is VMEM-resident across the M
    grid (constant out index_map); per-channel sum / sum-of-squares accumulate
    in scratch; the last grid step normalizes the whole block in place, so the
    f32 intermediate never touches HBM.
    """
    i = pl.program_id(0)

    @pl.when(i == 0)
    def _init():
        s_ref[...] = jnp.zeros_like(s_ref)
        ss_ref[...] = jnp.zeros_like(ss_ref)

    y = jnp.dot(a_ref[...], b_ref[...], preferred_element_type=jnp.float32)
    s_ref[...] += jnp.sum(y, axis=0, keepdims=True)
    ss_ref[...] += jnp.sum(y * y, axis=0, keepdims=True)
    row0 = pl.multiple_of(i * tm, tm)
    o_ref[pl.ds(row0, tm), :] = y

    @pl.when(i == pl.num_programs(0) - 1)
    def _finalize():
        mean = s_ref[...] * inv_m                       # (1, OC_pad)
        var = ss_ref[...] * inv_m - mean * mean         # biased (training-mode BN)
        scale = gamma_ref[...] * jax.lax.rsqrt(var + eps)
        shift = beta_ref[...] - mean * scale
        z = o_ref[...] * scale + shift
        o_ref[...] = jnp.where(z >= 0, z, neg_slope * z)


# ---------------------------------------------------------------------------
# Parameter setup & glue (plain JAX)
# ---------------------------------------------------------------------------

def _round_up(x, m):
    return ((x + m - 1) // m) * m


def _choose_tm(m, kd):
    """Pick the M tile: minimal M padding first, then prefer mt >= 2 (megacore),
    then the largest tile. Keeps the double-buffered bf16 A tile under ~8 MiB."""
    max_tm = max(8, min(1024, (8 << 20) // max(1, kd * 2 * 2)))
    cands = [t for t in (1024, 896, 768, 640, 512, 448, 384, 320,
                         256, 192, 128, 64, 32, 16, 8) if t <= max_tm]
    best_key, best = None, None
    for t in cands:
        m_p = _round_up(m, t)
        key = (m_p - m, 0 if m_p // t >= 2 else 1, -t)
        if best_key is None or key < best_key:
            best_key, best = key, (t, m_p)
    return best


def _vmem_cap_bytes():
    try:
        return int(pltpu.get_tpu_info().vmem_capacity_bytes)
    except Exception:
        return 64 << 20      # conservative: v7x per-TensorCore VMEM


def _wide_mxu():
    """True on 256-wide-MXU chips (v6e/v7x); False on v5e and older."""
    try:
        kind = jax.devices()[0].device_kind.lower()
    except Exception:
        return False
    return not any(v in kind for v in ("v2", "v3", "v4", "v5"))


def spectral_norm_weight(w, u, n_power_iterations=1, eps=1e-12):
    """PyTorch nn.utils.spectral_norm semantics (training forward, 1 power iter)."""
    # TODO(synk): PyTorch updates the `u` buffer in place on training forwards;
    #             this stateless version only returns the normalized weight
    #             (single-forward output is identical).
    oc = w.shape[0]
    w_mat = w.reshape(oc, -1)

    def l2n(v):
        return v / (jnp.linalg.norm(v) + eps)

    v = None
    for _ in range(n_power_iterations):
        v = l2n(w_mat.T @ u)
        u = l2n(w_mat @ v)
    sigma = u @ (w_mat @ v)
    return w / sigma


def _im2col_nhwc(x_nhwc, kh, kw, stride, padding):
    """Patches with K-dim ordered (kh, kw, c). Channels stay on the lane axis;
    the big patches tensor is written to HBM exactly once (no extra pad pass)."""
    n, h, w, c = x_nhwc.shape
    xp = jnp.pad(x_nhwc, ((0, 0), (padding, padding), (padding, padding), (0, 0)))
    oh = (h + 2 * padding - kh) // stride + 1
    ow = (w + 2 * padding - kw) // stride + 1
    cols = []
    for i in range(kh):
        for j in range(kw):
            cols.append(xp[:, i:i + stride * oh:stride, j:j + stride * ow:stride, :])
    patches = jnp.stack(cols, axis=3)                    # (n, oh, ow, kh*kw, c)
    return patches.reshape(n * oh * ow, kh * kw * c), oh, ow


def conv2d_wsn_forward(x, weight, u, gamma, beta, *, stride, padding,
                       bn_flag, eps=1e-5, compute_dtype=jnp.bfloat16):
    n, ic, h, w = x.shape
    oc, _, kh, kw = weight.shape
    neg_slope = 0.2

    # Spectral norm in f32 (tiny parameter setup).
    w_sn = spectral_norm_weight(weight.astype(jnp.float32), u.astype(jnp.float32))

    # NCHW -> NHWC once (smallest array to shuffle; channels land on lanes),
    # bf16 operands for the MXU.
    x_nhwc = jnp.transpose(x, (0, 2, 3, 1)).astype(compute_dtype)
    a, oh, ow = _im2col_nhwc(x_nhwc, kh, kw, stride, padding)       # (M, Kd) bf16
    # Permute the *small* weight to match the (kh, kw, c) K ordering of A.
    b = w_sn.transpose(2, 3, 1, 0).reshape(kh * kw * ic, oc).astype(compute_dtype)

    m, kd = a.shape
    oc_align = 256 if (_wide_mxu() and oc > 128) else 128
    oc_p = _round_up(oc, oc_align)
    tm, m_p = _choose_tm(m, kd)
    mt = m_p // tm

    # K is never padded: full-K A tiles + a VMEM-resident B (constant block
    # index -> DMA'd once) remove the K grid axis and the accumulator scratch.
    if m_p > m:   # usually 0 thanks to _choose_tm; A is still written only once
        a = jnp.pad(a, ((0, m_p - m), (0, 0)))
    b_p = jnp.pad(b, ((0, 0), (0, oc_p - oc)))

    # VMEM budget (double-buffer worst case), clamped to the chip's capacity.
    a_buf = 2 * tm * kd * 2
    b_buf = 2 * kd * oc_p * 2
    out_buf = (2 * m_p * oc_p * 4) if bn_flag else (2 * tm * oc_p * 4)
    need = a_buf + b_buf + out_buf + 16 * oc_p * 4 + (4 << 20)
    vmem_limit = int(min(max(need, 24 << 20), _vmem_cap_bytes() - (8 << 20)))

    if not bn_flag:
        out_p = pl.pallas_call(
            partial(_matmul_lrelu_kernel, neg_slope=neg_slope),
            out_shape=jax.ShapeDtypeStruct((m_p, oc_p), jnp.float32),
            grid_spec=pltpu.PrefetchScalarGridSpec(
                num_scalar_prefetch=0,
                grid=(mt,),
                in_specs=[pl.BlockSpec((tm, kd), lambda i: (i, 0)),
                          pl.BlockSpec((kd, oc_p), lambda i: (0, 0))],
                out_specs=pl.BlockSpec((tm, oc_p), lambda i: (i, 0))),
            compiler_params=pltpu.CompilerParams(
                dimension_semantics=("parallel",),
                vmem_limit_bytes=vmem_limit),
        )(a, b_p)
    else:
        # Padded OC columns have var=0 -> rsqrt(eps) is large, but gamma is
        # zero-padded so scale/shift are exactly 0 there (columns sliced off).
        gamma_p = jnp.pad(gamma.astype(jnp.float32), (0, oc_p - oc)).reshape(1, oc_p)
        beta_p = jnp.pad(beta.astype(jnp.float32), (0, oc_p - oc)).reshape(1, oc_p)
        # TODO(synk): for very large N*OH*OW (resident output block > VMEM) fall
        #             back to a two-pass stats-then-apply variant.
        out_p = pl.pallas_call(
            partial(_matmul_bn_lrelu_kernel, tm=tm, inv_m=1.0 / m,
                    eps=eps, neg_slope=neg_slope),
            out_shape=jax.ShapeDtypeStruct((m_p, oc_p), jnp.float32),
            grid_spec=pltpu.PrefetchScalarGridSpec(
                num_scalar_prefetch=0,
                grid=(mt,),
                in_specs=[pl.BlockSpec((tm, kd), lambda i: (i, 0)),
                          pl.BlockSpec((kd, oc_p), lambda i: (0, 0)),
                          pl.BlockSpec((1, oc_p), lambda i: (0, 0)),
                          pl.BlockSpec((1, oc_p), lambda i: (0, 0))],
                out_specs=pl.BlockSpec((m_p, oc_p), lambda i: (0, 0)),
                scratch_shapes=[pltpu.VMEM((1, oc_p), jnp.float32),
                                pltpu.VMEM((1, oc_p), jnp.float32)]),
            compiler_params=pltpu.CompilerParams(
                dimension_semantics=("arbitrary",),   # cross-step stats carry
                vmem_limit_bytes=vmem_limit),
        )(a, b_p, gamma_p, beta_p)

    out = out_p[:m, :oc].reshape(n, oh, ow, oc)           # NHWC
    return jnp.transpose(out, (0, 3, 1, 2))               # NCHW (PyTorch layout)


# ---------------------------------------------------------------------------
# Reference (XLA) — same bf16 operand quantization, f32 accumulation
# ---------------------------------------------------------------------------

def reference_forward(x, weight, u, gamma, beta, *, stride, padding,
                      bn_flag, eps=1e-5, compute_dtype=jnp.bfloat16):
    w_sn = spectral_norm_weight(weight.astype(jnp.float32), u.astype(jnp.float32))
    y = jax.lax.conv_general_dilated(
        x.astype(compute_dtype), w_sn.astype(compute_dtype),
        (stride, stride), [(padding, padding), (padding, padding)],
        dimension_numbers=('NCHW', 'OIHW', 'NCHW'),
        preferred_element_type=jnp.float32)
    if bn_flag:
        mean = y.mean(axis=(0, 2, 3), keepdims=True)
        var = ((y - mean) ** 2).mean(axis=(0, 2, 3), keepdims=True)
        y = (y - mean) / jnp.sqrt(var + eps)
        y = y * gamma.reshape(1, -1, 1, 1) + beta.reshape(1, -1, 1, 1)
    return jnp.where(y >= 0, y, 0.2 * y)


# ---------------------------------------------------------------------------

if __name__ == "__main__":
    # Small DCGAN-discriminator-like config:
    #   Conv2d_wSN(in_channels=4, out_channels=8, kernel_size=4, stride=2,
    #              padding=1, bias=False, bn_flag=...)
    N, IC, H, W = 2, 4, 16, 16
    OC, K, STRIDE, PAD = 8, 4, 2, 1

    key = jax.random.PRNGKey(0)
    kx, kw_, ku = jax.random.split(key, 3)

    x = jax.random.normal(kx, (N, IC, H, W), dtype=jnp.float32)
    weight = 0.1 * jax.random.normal(kw_, (OC, IC, K, K), dtype=jnp.float32)
    u0 = jax.random.normal(ku, (OC,), dtype=jnp.float32)
    u0 = u0 / (jnp.linalg.norm(u0) + 1e-12)
    gamma = jnp.ones((OC,), dtype=jnp.float32)   # BatchNorm weight init
    beta = jnp.zeros((OC,), dtype=jnp.float32)   # BatchNorm bias init

    # bias=False in the module, so no conv bias term.
    for bn_flag in (False, True):
        y = conv2d_wsn_forward(x, weight, u0, gamma, beta,
                               stride=STRIDE, padding=PAD, bn_flag=bn_flag)
        y = jax.block_until_ready(y)
        y_ref = reference_forward(x, weight, u0, gamma, beta,
                                  stride=STRIDE, padding=PAD, bn_flag=bn_flag)
        assert y.shape == (N, OC, H // STRIDE, W // STRIDE)
        err = jnp.abs(y - y_ref).max()
        assert jnp.allclose(y, y_ref, atol=2e-3, rtol=2e-3), \
            f"mismatch (bn_flag={bn_flag}): max err {err}"

    print("KERNEL_OK")
</pallas_src>

<mosaic_0001>
module attributes {stable_mosaic.version = 11 : i64} {
  func.func @_matmul_lrelu_kernel(%arg0: i32, %arg1: memref<64x64xbf16, #tpu.memory_space<vmem>>, %arg2: memref<64x128xbf16, #tpu.memory_space<vmem>>, %arg3: memref<64x128xf32, #tpu.memory_space<vmem>>) attributes {dimension_semantics = [#tpu.dimension_semantics<parallel>], iteration_bounds = array<i64: 2>, scalar_prefetch = 0 : i64, scratch_operands = 0 : i64, tpu.core_type = #tpu.core_type<tc>, window_params = [{transform_indices = @transform_0, window_bounds = array<i64: 64, 64>}, {pipeline_mode = #tpu.pipeline_mode<synchronous>, transform_indices = @transform_1, window_bounds = array<i64: 64, 128>}, {transform_indices = @transform_2, window_bounds = array<i64: 64, 128>}]} {
    %c0 = arith.constant 0 : index
    %c0_0 = arith.constant 0 : index
    %0 = vector.load %arg1[%c0, %c0_0] : memref<64x64xbf16, #tpu.memory_space<vmem>>, vector<64x64xbf16>
    %c0_1 = arith.constant 0 : index
    %c0_2 = arith.constant 0 : index
    %1 = vector.load %arg2[%c0_1, %c0_2] : memref<64x128xbf16, #tpu.memory_space<vmem>>, vector<64x128xbf16>
    %cst = arith.constant dense<0.000000e+00> : vector<64x128xf32>
    %2 = tpu.matmul %0, %1, %cst {dimension_numbers = #tpu.dot_dimension_numbers<[1], [0], [0], [1], [0, 0, 1, 1], [], []>} : vector<64x64xbf16>, vector<64x128xbf16>, vector<64x128xf32> -> vector<64x128xf32>
    %cst_3 = arith.constant 0.000000e+00 : f32
    %3 = vector.broadcast %cst_3 : f32 to vector<64x128xf32>
    %4 = arith.cmpf oge, %2, %3 : vector<64x128xf32>
    %cst_4 = arith.constant 2.000000e-01 : f32
    %5 = vector.broadcast %cst_4 : f32 to vector<64x128xf32>
    %6 = arith.mulf %5, %2 : vector<64x128xf32>
    %7 = arith.select %4, %2, %6 : vector<64x128xi1>, vector<64x128xf32>
    %c0_5 = arith.constant 0 : index
    %c0_6 = arith.constant 0 : index
    %8 = vector.load %arg3[%c0_5, %c0_6] : memref<64x128xf32, #tpu.memory_space<vmem>>, vector<64x128xf32>
    tpu.vector_store %arg3[%c0_5, %c0_6], %7 {strides = array<i32>} : memref<64x128xf32, #tpu.memory_space<vmem>>, vector<64x128xf32>,
    return
  }
  func.func @transform_0(%arg0: i32) -> (i32, i32) {
    %c0_i32 = arith.constant 0 : i32
    %c0_i32_0 = arith.constant 0 : i32
    return %arg0, %c0_i32 : i32, i32
  }
  func.func @transform_1(%arg0: i32) -> (i32, i32) {
    %c0_i32 = arith.constant 0 : i32
    %c0_i32_0 = arith.constant 0 : i32
    %c0_i32_1 = arith.constant 0 : i32
    return %c0_i32, %c0_i32_0 : i32, i32
  }
  func.func @transform_2(%arg0: i32) -> (i32, i32) {
    %c0_i32 = arith.constant 0 : i32
    %c0_i32_0 = arith.constant 0 : i32
    return %arg0, %c0_i32 : i32, i32
  }
}

</mosaic_0001>

<llo_original>
// kernel: tpu_custom_call.1
$region0: #{tpu_custom_call.1}
  #allocation0 [shape = 'u32[]', space=smem, size = 0x4, offset = 0x4, fixed_abs, tag = 'smem constant byte address 0x4 - core index']
  #allocation1 [shape = 'u32[144,128]{1,0:T(1,128)}', space=vmem, size = 0x12000, scoped, tag = 'internal scratch']
  %s0 = inlined_call_operand.vmem [shape: bf16[128,64], index: 0, kind: input, shape index: {}]
  %s1 = inlined_call_operand.vmem [shape: bf16[64,128], index: 1, kind: input, shape index: {}]
  %s2 = inlined_call_operand.hbm [shape: f32[128,128], index: 2, kind: output, shape index: {}]
  %s3 = sld [smem:[#allocation0]]
  $region41: #{tpu_custom_call.1} parent=0
    _
  %s5 = ssub.s32 1, %s3
  %s6 = scalar_select 0, %s5, %s3
  $region1: #{tpu_custom_call.1} parent=0
    #allocation2 [shape = 'u8[65536]{0}', space=vmem, size = 0x10000, scoped, tag = 'output window, operand 0']
    #allocation3 [shape = 's32[2]{0}', space=sflag, size = 0x8, scoped, tag = 'scoped memory for tpu_custom_call.1']
    %7 = vsyncpa [#allocation3], 0
    %s8 = scalar_lea.sflag [#allocation3], 1
    %9 = vsyncpa %s8, 0
    loop: start=0, step=1, limit=4
    $region2: #{tpu_custom_call.1} parent=1 // loop_pre_header
      _
    $region3: #{tpu_custom_call.1} parent=1 // loop_header
      %s11 = sphi 0, %s15
      %p12 = scmp.ge.s32.totalorder %s11, 4
      %s21 = sphi 0, %s23
      %s24 = sphi 0, %s21
      %s25 = sphi 0, %s24
      %s41 = sphi 0, %s25
      %s45 = sphi 0, %s45
      %s47 = sphi 0, %s45
      %s48 = sphi 0, %s47
      %s62 = sphi 0, %s48
      %s68 = sphi 0, %s70
      %s71 = sphi 0, %s68
      %s72 = sphi 0, %s71
      %s88 = sphi 0, %s72
    $region4: #{tpu_custom_call.1} parent=1 // loop_header_branch
      %14 = sbr.rel (%p12) target = $region8
    $region5: #{tpu_custom_call.1} parent=1 // loop_body
      %s16 = ssub.s32 %s11, 1
      %s17 = ssub.s32 %s11, 2
      %s18 = sadd.s32 %s11, 1
      %s19 = ssub.s32 %s11, %s18
      %p20 = scmp.eq.s32.totalorder %s19, 0
      %s22 = sadd.s32 %s21, 1
      %s23 = scalar_select %p20, %s21, %s22
      %p26 = pneg %p20
      %p27 = scmp.eq.s32.totalorder %s11, 1
      %p28 = por %p26, %p27
      %p29 = scmp.ne.s32.totalorder %s21, %s24
      %p30 = scmp.eq.s32.totalorder %s11, 0
      %p31 = por %p29, %p30
      %p32 = scmp.ne.s32.totalorder %s21, %s24
      %p33 = scmp.eq.s32.totalorder %s16, 1
      %p34 = por %p32, %p33
      %p35 = scmp.ne.s32.totalorder %s24, %s25
      %p36 = scmp.eq.s32.totalorder %s16, 0
      %p37 = por %p35, %p36
      %p38 = scmp.ne.s32.totalorder %s24, %s25
      %p39 = scmp.eq.s32.totalorder %s17, 1
      %p40 = por %p38, %p39
      %p42 = scmp.ne.s32.totalorder %s25, %s41
      %p43 = scmp.eq.s32.totalorder %s17, 0
      %p44 = por %p42, %p43
      %s46 = sadd.s32 %s45, 1
      %p49 = scmp.eq.s32.totalorder %s11, 1
      %p50 = scmp.ne.s32.totalorder %s45, %s47
      %p51 = scmp.eq.s32.totalorder %s11, 0
      %p52 = por %p50, %p51
      %p53 = scmp.ne.s32.totalorder %s45, %s47
      %p54 = scmp.eq.s32.totalorder %s16, 1
      %p55 = por %p53, %p54
      %p56 = scmp.ne.s32.totalorder %s47, %s48
      %p57 = scmp.eq.s32.totalorder %s16, 0
      %p58 = por %p56, %p57
      %p59 = scmp.ne.s32.totalorder %s47, %s48
      %p60 = scmp.eq.s32.totalorder %s17, 1
      %p61 = por %p59, %p60
      %p63 = scmp.ne.s32.totalorder %s48, %s62
      %p64 = scmp.eq.s32.totalorder %s17, 0
      %p65 = por %p63, %p64
      %s66 = ssub.s32 %s11, %s18
      %p67 = scmp.eq.s32.totalorder %s66, 0
      %s69 = sadd.s32 %s68, 1
      %s70 = scalar_select %p67, %s68, %s69
      %p73 = pneg %p67
      %p74 = scmp.eq.s32.totalorder %s11, 1
      %p75 = por %p73, %p74
      %p76 = scmp.ne.s32.totalorder %s68, %s71
      %p77 = scmp.eq.s32.totalorder %s11, 0
      %p78 = por %p76, %p77
      %p79 = scmp.ne.s32.totalorder %s68, %s71
      %p80 = scmp.eq.s32.totalorder %s16, 1
      %p81 = por %p79, %p80
      %p82 = scmp.ne.s32.totalorder %s71, %s72
      %p83 = scmp.eq.s32.totalorder %s16, 0
      %p84 = por %p82, %p83
      %p85 = scmp.ne.s32.totalorder %s71, %s72
      %p86 = scmp.eq.s32.totalorder %s17, 1
      %p87 = por %p85, %p86
      %p89 = scmp.ne.s32.totalorder %s72, %s88
      %p90 = scmp.eq.s32.totalorder %s17, 0
      %p91 = por %p89, %p90
      %p92 = scmp.le.s32.totalorder 1, %s11
      %p93 = scmp.lt.s32.totalorder %s11, 3
      %p94 = pnand %p92, %p93
      %p95 = pneg %p94
      // Predicated region
      $region9: #{tpu_custom_call.1} parent=5 // pred_check
        _
      $region10: #{tpu_custom_call.1} parent=5 // pred_check_branch
        %97 = sbr.rel (%p94) target = $region12
      $region11: #{tpu_custom_call.1} parent=5 // pred_region
        %s98 = ssub.s32 %s11, 1
        // Predicated region
        $region13: #{tpu_custom_call.1} parent=11 // pred_check
          %p99 = pneg %p58
        $region14: #{tpu_custom_call.1} parent=11 // pred_check_branch
          %101 = sbr.rel (%p99) target = $region16
        $region15: #{tpu_custom_call.1} parent=11 // pred_region
          _
        $region16: #{tpu_custom_call.1} parent=11 // pred_fallthru
          _
      $region12: #{tpu_custom_call.1} parent=5 // pred_fallthru
        _
      %p102 = scmp.lt.s32.totalorder %s11, 2
      // Predicated region
      $region17: #{tpu_custom_call.1} parent=5 // pred_check
        %p103 = pneg %p102
      $region18: #{tpu_custom_call.1} parent=5 // pred_check_branch
        %105 = sbr.rel (%p103) target = $region20
      $region19: #{tpu_custom_call.1} parent=5 // pred_region
        // Predicated region
        $region21: #{tpu_custom_call.1} parent=19 // pred_check
          %p106 = pneg %p31
        $region22: #{tpu_custom_call.1} parent=19 // pred_check_branch
          %108 = sbr.rel (%p106) target = $region24
        $region23: #{tpu_custom_call.1} parent=19 // pred_region
          %s109 = smul.u32 8, %s11
          %p110 = scmp.lt.s32.totalorder %s109, 15
          %s111 = scalar_select %p110, %s109, 15
          %s112 = smul.addr %s111, 4
          %s113 = scalar_lea.vmem %s0, %s112
          %s114 = smul.u32 8, %s11
        $region24: #{tpu_custom_call.1} parent=19 // pred_fallthru
          _
      $region20: #{tpu_custom_call.1} parent=5 // pred_fallthru
        _
      %p115 = scmp.le.s32.totalorder 1, %s11
      %p116 = scmp.lt.s32.totalorder %s11, 3
      %p117 = pnand %p115, %p116
      %p118 = pneg %p117
      // Predicated region
      $region25: #{tpu_custom_call.1} parent=5 // pred_check
        _
      $region26: #{tpu_custom_call.1} parent=5 // pred_check_branch
        %120 = sbr.rel (%p117) target = $region28
      $region27: #{tpu_custom_call.1} parent=5 // pred_region
        %s121 = ssub.s32 %s11, 1
        %s122 = smul.u32 8, %s16
        %p123 = scmp.lt.s32.totalorder %s122, 15
        %s124 = scalar_select %p123, %s122, 15
        %s125 = smul.addr %s124, 4
        %s126 = scalar_lea.vmem %s0, %s125
        %p127 = pneg %p37
        %p128 = pneg %p34
        %p129 = pneg %p58
        %p130 = pneg %p55
        %p131 = pneg %p84
        %p132 = pneg %p81
        %s133 = sand.u32 %s71, 1
        %s134 = scalar_lea.sflag [#allocation3], %s133
        %s135 = sand.u32 %s71, 1
        %s136 = smul.addr %s135, 64
        %s137 = scalar_lea.vmem [#allocation2], %s136
        %s138 = smul.u32 8, %s16
        %p139 = scmp.lt.s32.totalorder %s138, 15
        %s140 = scalar_select %p139, %s138, 15
        %s141 = smul.addr %s140, 4
        %s142 = scalar_lea.vmem %s0, %s141
        %s143 = smul.u32 8, %s16
        %s144 = smul.u32 8, %s16
        %v146 = vld [vmem:[%s142] sm:$0xf]
        %v147 = vld [vmem:[%s142 + $0x4] sm:$0xf]
        %v148 = vld [vmem:[%s142 + $0x8] sm:$0xf]
        %v149 = vld [vmem:[%s142 + $0xc] sm:$0xf]
        %v150 = vld [vmem:[%s142 + $0x10] sm:$0xf]
        %v151 = vld [vmem:[%s142 + $0x14] sm:$0xf]
        %v152 = vld [vmem:[%s142 + $0x18] sm:$0xf]
        %v153 = vld [vmem:[%s142 + $0x1c] sm:$0xf]
        %v154 = vld [vmem:[%s1] sm:$0xf]
        %v155 = vld [vmem:[%s1 + $0x4] sm:$0xf]
        %v156 = vld [vmem:[%s1 + $0x8] sm:$0xf]
        %v157 = vld [vmem:[%s1 + $0xc] sm:$0xf]
        %v158 = vld [vmem:[%s1 + $0x10] sm:$0xf]
        %v159 = vld [vmem:[%s1 + $0x14] sm:$0xf]
        %v160 = vld [vmem:[%s1 + $0x18] sm:$0xf]
        %v161 = vld [vmem:[%s1 + $0x1c] sm:$0xf]
        %v170 = vunpack.c.l.b16 %v146
        %v171 = vunpack.c.l.b16 %v147
        %v172 = vunpack.c.l.b16 %v148
        %v173 = vunpack.c.l.b16 %v149
        %v174 = vunpack.c.l.b16 %v150
        %v175 = vunpack.c.l.b16 %v151
        %v176 = vunpack.c.l.b16 %v152
        %v177 = vunpack.c.l.b16 %v153
        %v178 = vpack.c.b16 %v171, %v170
        %v179 = vpack.c.b16 %v173, %v172
        %v180 = vpack.c.b16 %v175, %v174
        %v181 = vpack.c.b16 %v177, %v176
        %v190 = vunpack.c.l.b16 %v154
        %v191 = vunpack.c.l.b16 %v155
        %v192 = vunpack.c.l.b16 %v156
        %v193 = vunpack.c.l.b16 %v157
        %v194 = vunpack.c.l.b16 %v158
        %v195 = vunpack.c.l.b16 %v159
        %v196 = vunpack.c.l.b16 %v160
        %v197 = vunpack.c.l.b16 %v161
        %v198 = vpack.c.b16 %v191, %v190
        %v199 = vpack.c.b16 %v193, %v192
        %v200 = vpack.c.b16 %v195, %v194
        %v201 = vpack.c.b16 %v197, %v196
        %vm206 = vcmask 523264
        %v208 = vsel %vm206, %v178, 0
        %v211 = vsel %vm206, %v179, 0
        %v214 = vsel %vm206, %v180, 0
        %v217 = vsel %vm206, %v181, 0
        %219 = vmatprep.subr.bf16.mxu0 0
        %220 = vmatpush1.bf16.msra.mxu0 %v198
        %221 = vmatprep.subr.bf16.mxu0 0
        %222 = vmatpush1.bf16.msra.mxu0 %v199
        %223 = vmatprep.subr.bf16.mxu0 0
        %224 = vmatpush1.bf16.msra.mxu0 %v200
        %225 = vmatprep.subr.bf16.mxu0 0
        %226 = vmatpush1.bf16.msra.mxu0 %v201
        %227 = vmatprep.subr.bf16.mxu0 0
        %228 = vmatpush1.bf16.msra.mxu0 0
        %229 = vmatprep.subr.bf16.mxu0 0
        %230 = vmatpush1.bf16.msra.mxu0 0
        %231 = vmatprep.subr.bf16.mxu0 0
        %232 = vmatpush1.bf16.msra.mxu0 0
        %233 = vmatprep.subr.bf16.mxu0 0
        %234 = vmatpush1.bf16.msra.mxu0 0
        %235 = vmatprep.subr.bf16.mxu0 0
        %236 = vmatpush1.bf16.msra.mxu0 0
        %237 = vmatprep.subr.bf16.mxu0 0
        %238 = vmatpush1.bf16.msra.mxu0 0
        %239 = vmatprep.subr.bf16.mxu0 0
        %240 = vmatpush1.bf16.msra.mxu0 0
        %241 = vmatprep.subr.bf16.mxu0 0
        %242 = vmatpush1.bf16.msra.mxu0 0
        %243 = vmatprep.subr.bf16.mxu0 0
        %244 = vmatpush1.bf16.msra.mxu0 0
        %245 = vmatprep.subr.bf16.mxu0 0
        %246 = vmatpush1.bf16.msra.mxu0 0
        %247 = vmatprep.subr.bf16.mxu0 0
        %248 = vmatpush1.bf16.msra.mxu0 0
        %249 = vmatprep.subr.bf16.mxu0 0
        %250 = vmatpush1.bf16.msra.mxu0 0
        %251 = vmatprep.mubr.bf16.mxu0 0
        %252 = vmatmul.mubr.bf16.gmra.mrb[0].mxu0 %v208
        %v253 = vpop.f32.mrb[0].mxu0
        %v254 = vadd.f32 0.0, %v253
        %v255 = vpop.f32.mrb[0].mxu0
        %v256 = vpop.f32.mrb[0].mxu0
        %v257 = vadd.f32 0.0, %v256
        %v258 = vpop.f32.mrb[0].mxu0
        %259 = vmatprep.mubr.bf16.mxu0 0
        %260 = vmatmul.mubr.bf16.gmra.mrb[0].mxu0 %v211
        %v261 = vpop.f32.mrb[0].mxu0
        %v262 = vadd.f32 0.0, %v261
        %v263 = vpop.f32.mrb[0].mxu0
        %v264 = vpop.f32.mrb[0].mxu0
        %v265 = vadd.f32 0.0, %v264
        %v266 = vpop.f32.mrb[0].mxu0
        %267 = vmatprep.mubr.bf16.mxu0 0
        %268 = vmatmul.mubr.bf16.gmra.mrb[0].mxu0 %v214
        %v269 = vpop.f32.mrb[0].mxu0
        %v270 = vadd.f32 0.0, %v269
        %v271 = vpop.f32.mrb[0].mxu0
        %v272 = vpop.f32.mrb[0].mxu0
        %v273 = vadd.f32 0.0, %v272
        %v274 = vpop.f32.mrb[0].mxu0
        %275 = vmatprep.mubr.bf16.mxu0 0
        %276 = vmatmul.mubr.bf16.gmra.mrb[0].mxu0 %v217
        %v277 = vpop.f32.mrb[0].mxu0
        %v278 = vadd.f32 0.0, %v277
        %v279 = vpop.f32.mrb[0].mxu0
        %v280 = vpop.f32.mrb[0].mxu0
        %v281 = vadd.f32 0.0, %v280
        %v282 = vpop.f32.mrb[0].mxu0
        %283 = vdwg.mxu0
        %vm284 = vcmp.ge.f32.partialorder %v254, 0.0
        %vm285 = vcmp.ge.f32.partialorder %v257, 0.0
        %vm286 = vcmp.ge.f32.partialorder %v262, 0.0
        %vm287 = vcmp.ge.f32.partialorder %v265, 0.0
        %vm288 = vcmp.ge.f32.partialorder %v270, 0.0
        %vm289 = vcmp.ge.f32.partialorder %v273, 0.0
        %vm290 = vcmp.ge.f32.partialorder %v278, 0.0
        %vm291 = vcmp.ge.f32.partialorder %v281, 0.0
        %v292 = vmul.f32 %v254, 0.2
        %v293 = vmul.f32 %v257, 0.2
        %v294 = vmul.f32 %v262, 0.2
        %v295 = vmul.f32 %v265, 0.2
        %v296 = vmul.f32 %v270, 0.2
        %v297 = vmul.f32 %v273, 0.2
        %v298 = vmul.f32 %v278, 0.2
        %v299 = vmul.f32 %v281, 0.2
        %v300 = vsel %vm284, %v254, %v292
        %v301 = vsel %vm285, %v257, %v293
        %v302 = vsel %vm286, %v262, %v294
        %v303 = vsel %vm287, %v265, %v295
        %v304 = vsel %vm288, %v270, %v296
        %v305 = vsel %vm289, %v273, %v297
        %v306 = vsel %vm290, %v278, %v298
        %v307 = vsel %vm291, %v281, %v299
        %308 = vst [vmem:[%s137] sm:$0xff] %v300
        %309 = vst [vmem:[%s137 + $0x8] sm:$0xff] %v301
        %310 = vst [vmem:[%s137 + $0x10] sm:$0xff] %v302
        %311 = vst [vmem:[%s137 + $0x18] sm:$0xff] %v303
        %312 = vst [vmem:[%s137 + $0x20] sm:$0xff] %v304
        %313 = vst [vmem:[%s137 + $0x28] sm:$0xff] %v305
        %314 = vst [vmem:[%s137 + $0x30] sm:$0xff] %v306
        %315 = vst [vmem:[%s137 + $0x38] sm:$0xff] %v307
        %s316 = sand.u32 %s71, 1
        %s317 = scalar_lea.sflag [#allocation3], %s316
        %s318 = sand.u32 %s71, 1
        %s319 = smul.addr %s318, 64
        %s320 = scalar_lea.vmem [#allocation2], %s319
        // Predicated region
        $region29: #{tpu_custom_call.1} parent=27 // pred_check
          %p321 = pneg %p81
        $region30: #{tpu_custom_call.1} parent=27 // pred_check_branch
          %323 = sbr.rel (%p321) target = $region32
        $region31: #{tpu_custom_call.1} parent=27 // pred_region
          %s324 = smul.u32 8, %s16
          %s326 = ssub.s32 1024, 1024
          %327 = vsyncadd %s317, %s326
          %s328 = smul.addr %s324, 128
          %s329 = scalar_lea.hbm %s2, %s328
          %s330 = sshll.u32 %s320, 4
          %s331 = int_to_ptr.vmem [resolvable:$true] %s330
          %336 = dma.vmem_to_hbm [thread:$0]  %s331, 1024, %s329, %s317, 128, 128, 8
        $region32: #{tpu_custom_call.1} parent=27 // pred_fallthru
          _
      $region28: #{tpu_custom_call.1} parent=5 // pred_fallthru
        _
      %p337 = scmp.le.s32.totalorder 2, %s11
      // Predicated region
      $region33: #{tpu_custom_call.1} parent=5 // pred_check
        %p338 = pneg %p337
      $region34: #{tpu_custom_call.1} parent=5 // pred_check_branch
        %340 = sbr.rel (%p338) target = $region36
      $region35: #{tpu_custom_call.1} parent=5 // pred_region
        %s341 = ssub.s32 %s11, 2
        // Predicated region
        $region37: #{tpu_custom_call.1} parent=35 // pred_check
          %p342 = pneg %p87
        $region38: #{tpu_custom_call.1} parent=35 // pred_check_branch
          %344 = sbr.rel (%p342) target = $region40
        $region39: #{tpu_custom_call.1} parent=35 // pred_region
          %s345 = sand.u32 %s72, 1
          %s346 = scalar_lea.sflag [#allocation3], %s345
          %s347 = sand.u32 %s72, 1
          %s348 = smul.addr %s347, 64
          %s349 = scalar_lea.vmem [#allocation2], %s348
          %350 = dma.done %s346, 1024
        $region40: #{tpu_custom_call.1} parent=35 // pred_fallthru
          _
      $region36: #{tpu_custom_call.1} parent=5 // pred_fallthru
        _
    $region6: #{tpu_custom_call.1} parent=1 // loop_footer
      %s15 = sadd.s32 1, %s11
    $region7: #{tpu_custom_call.1} parent=1 // loop_footer_branch
      %10 = sbr.rel target = $region3
    $region8: #{tpu_custom_call.1} parent=1 // loop_exit
      _
    %351 = vsyncpa [#allocation3], 1
    %s352 = scalar_lea.sflag [#allocation3], 1
    %353 = vsyncpa %s352, 1

</llo_original>
